<compile_context>
chip_gen: v5e
topology: v5e:2x2
jax: 0.10.0
libtpu: 0.0.40
codegen_flags: <defaults>
</compile_context>

<pallas_src>
import numpy as np
import jax
import jax.numpy as jnp
from jax.experimental import pallas as pl
from jax.experimental.pallas import tpu as pltpu


# ---------------------------------------------------------------------------
# Kernels
# ---------------------------------------------------------------------------

def _pad_kernel_whole_plane(x_ref, o_ref):
    """Replicate-pad P whole (H, W) planes to (H_, W_) via direct region writes."""
    P, H, W = x_ref.shape
    _, H_, W_ = o_ref.shape

    x = x_ref[...]                                                  # (P, H, W)
    o_ref[:, :H, :W] = x                                            # interior copy
    if W_ > W:
        # Right strip: broadcast the last column across the new lanes.
        o_ref[:, :H, W:] = jnp.broadcast_to(x[:, :, W - 1:W], (P, H, W_ - W))
    if H_ > H:
        last = x[:, H - 1:H, :]                                     # (P, 1, W)
        o_ref[:, H:, :W] = jnp.broadcast_to(last, (P, H_ - H, W))
        if W_ > W:
            o_ref[:, H:, W:] = jnp.broadcast_to(
                last[:, :, W - 1:W], (P, H_ - H, W_ - W))


def _make_pad_kernel_row_tiled(H, W, W_, TH, t_last, lv):
    """Row-tiled variant for planes too large for a single VMEM block.

    Grid is (M, n_row_tiles).  The input BlockSpec clamps its row-block index
    to `t_last`, so for t >= t_last the kernel always sees the boundary input
    tile; `lv` (the row of the true last image row inside that tile) and the
    copy/replicate split are therefore STATIC, and every slice below is static.
    """

    def kernel(x_ref, o_ref):
        P = x_ref.shape[0]
        t = pl.program_id(1)
        valid = lv + 1  # rows of the boundary input tile that are real image rows

        def _store_rows(rows, r0, r1):
            # `rows`: (P, r1-r0, W) value for output rows [r0, r1) of this tile.
            o_ref[:, r0:r1, :W] = rows
            if W_ > W:
                o_ref[:, r0:r1, W:] = jnp.broadcast_to(
                    rows[:, :, W - 1:W], (P, r1 - r0, W_ - W))

        @pl.when(t < t_last)
        def _interior():                      # straight copy (+ right pad)
            _store_rows(x_ref[...], 0, TH)

        @pl.when(t == t_last)
        def _boundary():                      # part copy, part bottom replicate
            x = x_ref[...]
            _store_rows(x[:, :valid, :], 0, valid)
            if valid < TH:
                rep = x[:, lv:lv + 1, :]
                _store_rows(jnp.broadcast_to(rep, (P, TH - valid, W)), valid, TH)

        @pl.when(t > t_last)
        def _replicate():                     # pure bottom replicate strip
            rep = x_ref[:, lv:lv + 1, :]
            _store_rows(jnp.broadcast_to(rep, (P, TH, W)), 0, TH)

    return kernel


# ---------------------------------------------------------------------------
# Budget helpers (generation-aware)
# ---------------------------------------------------------------------------

def _tpu_vmem_capacity_bytes():
    try:
        cap = getattr(pltpu.get_tpu_info(), "vmem_capacity_bytes", None)
        if cap:
            return int(cap)
    except Exception:
        pass
    return 64 * 1024 * 1024  # conservative (v7x-sized) fallback


def _padded_plane_vmem_bytes(H, W, itemsize):
    """VMEM footprint of one (H, W) plane with (8, 128) layout padding."""
    return ((H + 7) // 8 * 8) * ((W + 127) // 128 * 128) * itemsize


def _vmem_limit(cap, block_bytes):
    """vmem_limit_bytes covering double-buffered in+out blocks with headroom."""
    needed = 2 * block_bytes + (4 << 20)
    return int(min(max(needed, 32 << 20), int(cap * 0.8)))


# ---------------------------------------------------------------------------
# Wrappers (Alignment._align / Alignment._resume for 4-D, mode='pad')
# ---------------------------------------------------------------------------

def align(x, divisor=64.0, mode="pad", padding_mode="replicate",
          block_budget_bytes=None):
    """Pallas version of Alignment._align for 4-D NCHW input (mode='pad')."""
    assert mode == "pad" and padding_mode == "replicate"
    # TODO(synk): mode='resize' (bilinear F.interpolate) not implemented.
    # TODO(synk): 5-D input path (cat_k/split_k) not implemented.
    N, C, H, W = x.shape
    H_ = int(np.ceil(H / float(divisor)) * float(divisor))
    W_ = int(np.ceil(W / float(divisor)) * float(divisor))
    if H_ == H and W_ == W:
        return x

    M = N * C
    x_flat = x.reshape(M, H, W)
    itemsize = np.dtype(x.dtype).itemsize

    cap = _tpu_vmem_capacity_bytes()
    if block_budget_bytes is None:
        # One (in + out) block; Pallas double-buffers both, so real use ~2x this.
        # ~20% of physical VMEM: ~12.8 MiB blocks on v7x (64 MiB), ~25.6 MiB on
        # v5e/v6e (128 MiB) — much larger than the old fixed 8 MiB budget.
        block_budget_bytes = max(4 * 1024 * 1024, int(cap * 0.20))

    per_plane_vmem = (_padded_plane_vmem_bytes(H, W, itemsize)
                      + _padded_plane_vmem_bytes(H_, W_, itemsize))
    cost = pl.CostEstimate(
        flops=0, transcendentals=0,
        bytes_accessed=(H * W + H_ * W_) * itemsize * M)

    if per_plane_vmem <= block_budget_bytes or H < 8:
        # ----- whole-plane path: P planes per grid step -----
        P = int(min(M, max(1, block_budget_bytes // per_plane_vmem)))
        block_bytes = P * per_plane_vmem
        out_flat = pl.pallas_call(
            _pad_kernel_whole_plane,
            out_shape=jax.ShapeDtypeStruct((M, H_, W_), x.dtype),
            grid_spec=pltpu.PrefetchScalarGridSpec(
                num_scalar_prefetch=0,
                grid=(pl.cdiv(M, P),),           # partial last block is masked
                in_specs=[pl.BlockSpec((P, H, W), lambda i: (i, 0, 0))],
                out_specs=pl.BlockSpec((P, H_, W_), lambda i: (i, 0, 0)),
            ),
            compiler_params=pltpu.CompilerParams(
                dimension_semantics=("parallel",),   # megacore-shards M on v7x
                vmem_limit_bytes=_vmem_limit(cap, block_bytes)),
            cost_estimate=cost,
        )(x_flat)
    else:
        # ----- row-tiled path: one plane is too big for a single block -----
        row_vmem = (((W + 127) // 128 * 128)
                    + ((W_ + 127) // 128 * 128)) * itemsize
        TH = max(8, min((block_budget_bytes // row_vmem) // 8 * 8,
                        (H // 8) * 8))            # multiple of 8, <= H
        n_t = pl.cdiv(H_, TH)
        t_last = -(-H // TH) - 1                  # ceil(H / TH) - 1  (static)
        lv = (H - 1) - t_last * TH                # last real row inside that tile
        block_bytes = TH * row_vmem
        kernel = _make_pad_kernel_row_tiled(H, W, W_, TH, t_last, lv)
        out_flat = pl.pallas_call(
            kernel,
            out_shape=jax.ShapeDtypeStruct((M, H_, W_), x.dtype),
            grid_spec=pltpu.PrefetchScalarGridSpec(
                num_scalar_prefetch=0,
                grid=(M, n_t),
                in_specs=[pl.BlockSpec(
                    (1, TH, W),
                    lambda m, t: (m, jnp.minimum(t, t_last), 0))],
                out_specs=pl.BlockSpec((1, TH, W_), lambda m, t: (m, t, 0)),
            ),
            compiler_params=pltpu.CompilerParams(
                dimension_semantics=("parallel", "arbitrary"),
                vmem_limit_bytes=_vmem_limit(cap, block_bytes)),
            cost_estimate=cost,
        )(x_flat)

    return out_flat.reshape(N, C, H_, W_)


def resume(x, orig_shape):
    """Alignment._resume for mode='pad' — crop back to the original H, W (glue)."""
    return x[..., : orig_shape[-2], : orig_shape[-1]]


# ---------------------------------------------------------------------------
# Self-test
# ---------------------------------------------------------------------------

def _check(x, divisor, block_budget_bytes=None):
    y = jax.block_until_ready(
        align(x, divisor=divisor, block_budget_bytes=block_budget_bytes))
    H_ = int(np.ceil(x.shape[-2] / float(divisor)) * float(divisor))
    W_ = int(np.ceil(x.shape[-1] / float(divisor)) * float(divisor))
    assert y.shape == x.shape[:2] + (H_, W_), (y.shape, (H_, W_))
    pad_H, pad_W = H_ - x.shape[-2], W_ - x.shape[-1]
    y_ref = jnp.pad(x, ((0, 0), (0, 0), (0, pad_H), (0, pad_W)), mode="edge")
    np.testing.assert_array_equal(np.asarray(y), np.asarray(y_ref))
    x_back = resume(y, x.shape)
    np.testing.assert_array_equal(np.asarray(x_back), np.asarray(x))


if __name__ == "__main__":
    key = jax.random.PRNGKey(0)
    k1, k2, k3, k4 = jax.random.split(key, 4)

    # Main case: pad both H and W (16x16 -> 64x64).
    _check(jax.random.normal(k1, (2, 4, 16, 16), dtype=jnp.float32), divisor=64.0)
    # Pad W only.
    _check(jax.random.normal(k2, (2, 4, 16, 20), dtype=jnp.float32), divisor=8.0)
    # Pad H only (non-multiple-of-8 sublane offset in the store path).
    _check(jax.random.normal(k3, (2, 4, 12, 16), dtype=jnp.float32), divisor=8.0)
    # Row-tiled large-plane path, forced via a tiny block budget so it is
    # actually exercised/validated at small shapes.
    _check(jax.random.normal(k4, (1, 2, 20, 24), dtype=jnp.float32), divisor=16.0,
           block_budget_bytes=2048)
    # No-op case (already aligned) returns the input unchanged.
    x_ok = jax.random.normal(k1, (2, 4, 64, 64), dtype=jnp.float32)
    assert align(x_ok, divisor=64.0) is x_ok

    print("KERNEL_OK")
</pallas_src>

<mosaic_0001>
module attributes {stable_mosaic.version = 11 : i64} {
  func.func @_pad_kernel_whole_plane(%arg0: i32, %arg1: memref<8x16x16xf32, #tpu.memory_space<vmem>>, %arg2: memref<8x64x64xf32, #tpu.memory_space<vmem>>) attributes {dimension_semantics = [#tpu.dimension_semantics<parallel>], iteration_bounds = array<i64: 1>, scalar_prefetch = 0 : i64, scratch_operands = 0 : i64, tpu.core_type = #tpu.core_type<tc>, window_params = [{transform_indices = @transform_0, window_bounds = array<i64: 8, 16, 16>}, {transform_indices = @transform_1, window_bounds = array<i64: 8, 64, 64>}]} {
    %c0 = arith.constant 0 : index
    %c0_0 = arith.constant 0 : index
    %c0_1 = arith.constant 0 : index
    %0 = vector.load %arg1[%c0, %c0_0, %c0_1] : memref<8x16x16xf32, #tpu.memory_space<vmem>>, vector<8x16x16xf32>
    %c0_2 = arith.constant 0 : index
    %c0_3 = arith.constant 0 : index
    %c0_4 = arith.constant 0 : index
    %1 = vector.load %arg2[%c0_2, %c0_3, %c0_4] : memref<8x64x64xf32, #tpu.memory_space<vmem>>, vector<8x16x16xf32>
    tpu.vector_store %arg2[%c0_2, %c0_3, %c0_4], %0 {strides = array<i32>} : memref<8x64x64xf32, #tpu.memory_space<vmem>>, vector<8x16x16xf32>,
    %2 = vector.extract_strided_slice %0 {offsets = [0, 0, 15], sizes = [8, 16, 1], strides = [1, 1, 1]} : vector<8x16x16xf32> to vector<8x16x1xf32>
    %3 = vector.shape_cast %2 : vector<8x16x1xf32> to vector<8x16x1xf32>
    %4 = vector.broadcast %3 : vector<8x16x1xf32> to vector<8x16x48xf32>
    %c0_5 = arith.constant 0 : index
    %c0_6 = arith.constant 0 : index
    %c16 = arith.constant 16 : index
    %5 = vector.load %arg2[%c0_5, %c0_6, %c16] : memref<8x64x64xf32, #tpu.memory_space<vmem>>, vector<8x16x48xf32>
    tpu.vector_store %arg2[%c0_5, %c0_6, %c16], %4 {strides = array<i32>} : memref<8x64x64xf32, #tpu.memory_space<vmem>>, vector<8x16x48xf32>,
    %6 = vector.extract_strided_slice %0 {offsets = [0, 15, 0], sizes = [8, 1, 16], strides = [1, 1, 1]} : vector<8x16x16xf32> to vector<8x1x16xf32>
    %7 = vector.shape_cast %6 : vector<8x1x16xf32> to vector<8x1x16xf32>
    %8 = vector.broadcast %7 : vector<8x1x16xf32> to vector<8x48x16xf32>
    %c0_7 = arith.constant 0 : index
    %c16_8 = arith.constant 16 : index
    %c0_9 = arith.constant 0 : index
    %9 = vector.load %arg2[%c0_7, %c16_8, %c0_9] : memref<8x64x64xf32, #tpu.memory_space<vmem>>, vector<8x48x16xf32>
    tpu.vector_store %arg2[%c0_7, %c16_8, %c0_9], %8 {strides = array<i32>} : memref<8x64x64xf32, #tpu.memory_space<vmem>>, vector<8x48x16xf32>,
    %10 = vector.extract_strided_slice %6 {offsets = [0, 0, 15], sizes = [8, 1, 1], strides = [1, 1, 1]} : vector<8x1x16xf32> to vector<8x1x1xf32>
    %11 = vector.shape_cast %10 : vector<8x1x1xf32> to vector<8x1x1xf32>
    %12 = vector.broadcast %11 : vector<8x1x1xf32> to vector<8x48x48xf32>
    %c0_10 = arith.constant 0 : index
    %c16_11 = arith.constant 16 : index
    %c16_12 = arith.constant 16 : index
    %13 = vector.load %arg2[%c0_10, %c16_11, %c16_12] : memref<8x64x64xf32, #tpu.memory_space<vmem>>, vector<8x48x48xf32>
    tpu.vector_store %arg2[%c0_10, %c16_11, %c16_12], %12 {strides = array<i32>} : memref<8x64x64xf32, #tpu.memory_space<vmem>>, vector<8x48x48xf32>,
    return
  }
  func.func @transform_0(%arg0: i32) -> (i32, i32, i32) {
    %c0_i32 = arith.constant 0 : i32
    %c0_i32_0 = arith.constant 0 : i32
    %c0_i32_1 = arith.constant 0 : i32
    return %arg0, %c0_i32, %c0_i32_0 : i32, i32, i32
  }
  func.func @transform_1(%arg0: i32) -> (i32, i32, i32) {
    %c0_i32 = arith.constant 0 : i32
    %c0_i32_0 = arith.constant 0 : i32
    %c0_i32_1 = arith.constant 0 : i32
    return %arg0, %c0_i32, %c0_i32_0 : i32, i32, i32
  }
}

</mosaic_0001>

<llo_original>
// kernel: tpu_custom_call.1
$region0: #{tpu_custom_call.1}
  #allocation0 [shape = 'u32[]', space=smem, size = 0x4, offset = 0x4, fixed_abs, tag = 'smem constant byte address 0x4 - core index']
  #allocation1 [shape = 'u32[72,128]{1,0:T(1,128)}', space=vmem, size = 0x9000, scoped, tag = 'internal scratch']
  %s0 = inlined_call_operand.hbm [shape: f32[8,16,16], index: 0, kind: input, shape index: {}]
  %s1 = inlined_call_operand.hbm [shape: f32[8,64,64], index: 1, kind: output, shape index: {}]
  %s2 = sld [smem:[#allocation0]]
  $region18: #{tpu_custom_call.1} parent=0
    _
  %s4 = ssub.s32 1, %s2
  %s5 = scalar_select 0, %s4, %s2
  $region1: #{tpu_custom_call.1} parent=0
    #allocation2 [shape = 'u8[65536]{0}', space=vmem, size = 0x10000, scoped, tag = 'input window, operand 0, single buffered']
    #allocation3 [shape = 's32[1]{0}', space=sflag, size = 0x4, scoped, tag = 'scoped memory for tpu_custom_call.1']
    #allocation4 [shape = 's32[1]{0}', space=sflag, size = 0x4, scoped, tag = 'scoped memory for tpu_custom_call.1']
    #allocation5 [shape = 'u8[262144]{0}', space=vmem, size = 0x40000, scoped, tag = 'output window, operand 0, single buffered']
    %6 = vsyncpa [#allocation3], 0
    %7 = vsyncpa [#allocation4], 0
    // Predicated region
    $region2: #{tpu_custom_call.1} parent=1 // pred_check
      _
    $region3: #{tpu_custom_call.1} parent=1 // pred_check_branch
      %9 = sbr.rel (0) target = $region5
    $region4: #{tpu_custom_call.1} parent=1 // pred_region
      %11 = vsyncadd [#allocation3], 0
      %s12 = sshll.u32 %s0, 4
      %s13 = int_to_ptr.hbm [resolvable:$true] %s12
      %s14 = sshll.u32 [#allocation2], 4
      %s15 = int_to_ptr.vmem [resolvable:$true] %s14
      %20 = dma.hbm_to_vmem [thread:$0]  %s13, 2048, %s15, [#allocation3], 128, 128, 8
    $region5: #{tpu_custom_call.1} parent=1 // pred_fallthru
      _
    // Predicated region
    $region6: #{tpu_custom_call.1} parent=1 // pred_check
      _
    $region7: #{tpu_custom_call.1} parent=1 // pred_check_branch
      %22 = sbr.rel (0) target = $region9
    $region8: #{tpu_custom_call.1} parent=1 // pred_region
      %24 = dma.done [#allocation3], 2048
    $region9: #{tpu_custom_call.1} parent=1 // pred_fallthru
      _
    %v25 = vld [vmem:[#allocation2] sm:$0xff]
    %v26 = vld [vmem:[#allocation2 + $0x8] sm:$0xff]
    %v27 = vld [vmem:[#allocation2 + $0x10] sm:$0xff]
    %v28 = vld [vmem:[#allocation2 + $0x18] sm:$0xff]
    %v29 = vld [vmem:[#allocation2 + $0x20] sm:$0xff]
    %v30 = vld [vmem:[#allocation2 + $0x28] sm:$0xff]
    %v31 = vld [vmem:[#allocation2 + $0x30] sm:$0xff]
    %v32 = vld [vmem:[#allocation2 + $0x38] sm:$0xff]
    %v33 = vld [vmem:[#allocation2 + $0x40] sm:$0xff]
    %v34 = vld [vmem:[#allocation2 + $0x48] sm:$0xff]
    %v35 = vld [vmem:[#allocation2 + $0x50] sm:$0xff]
    %v36 = vld [vmem:[#allocation2 + $0x58] sm:$0xff]
    %v37 = vld [vmem:[#allocation2 + $0x60] sm:$0xff]
    %v38 = vld [vmem:[#allocation2 + $0x68] sm:$0xff]
    %v39 = vld [vmem:[#allocation2 + $0x70] sm:$0xff]
    %v40 = vld [vmem:[#allocation2 + $0x78] sm:$0xff]
    %vm41 = vcmask 130048
    %42 = vst.msk [vmem:[#allocation5] sm:$0xff] %vm41, %v25
    %43 = vst.msk [vmem:[#allocation5 + $0x8] sm:$0xff] %vm41, %v26
    %44 = vst.msk [vmem:[#allocation5 + $0x40] sm:$0xff] %vm41, %v27
    %45 = vst.msk [vmem:[#allocation5 + $0x48] sm:$0xff] %vm41, %v28
    %46 = vst.msk [vmem:[#allocation5 + $0x80] sm:$0xff] %vm41, %v29
    %47 = vst.msk [vmem:[#allocation5 + $0x88] sm:$0xff] %vm41, %v30
    %48 = vst.msk [vmem:[#allocation5 + $0xc0] sm:$0xff] %vm41, %v31
    %49 = vst.msk [vmem:[#allocation5 + $0xc8] sm:$0xff] %vm41, %v32
    %50 = vst.msk [vmem:[#allocation5 + $0x100] sm:$0xff] %vm41, %v33
    %51 = vst.msk [vmem:[#allocation5 + $0x108] sm:$0xff] %vm41, %v34
    %52 = vst.msk [vmem:[#allocation5 + $0x140] sm:$0xff] %vm41, %v35
    %53 = vst.msk [vmem:[#allocation5 + $0x148] sm:$0xff] %vm41, %v36
    %54 = vst.msk [vmem:[#allocation5 + $0x180] sm:$0xff] %vm41, %v37
    %55 = vst.msk [vmem:[#allocation5 + $0x188] sm:$0xff] %vm41, %v38
    %56 = vst.msk [vmem:[#allocation5 + $0x1c0] sm:$0xff] %vm41, %v39
    %57 = vst.msk [vmem:[#allocation5 + $0x1c8] sm:$0xff] %vm41, %v40
    %59 = vset.pattern.permute.xlu0 15
    %60 = vperm.xlu0 %59, %v25
    %v61 = vpop.permute.xlu0 %60
    %64 = vset.pattern.permute.xlu0 15
    %65 = vperm.xlu0 %64, %v26
    %v66 = vpop.permute.xlu0 %65
    %69 = vset.pattern.permute.xlu0 15
    %70 = vperm.xlu0 %69, %v27
    %v71 = vpop.permute.xlu0 %70
    %74 = vset.pattern.permute.xlu0 15
    %75 = vperm.xlu0 %74, %v28
    %v76 = vpop.permute.xlu0 %75
    %79 = vset.pattern.permute.xlu0 15
    %80 = vperm.xlu0 %79, %v29
    %v81 = vpop.permute.xlu0 %80
    %84 = vset.pattern.permute.xlu0 15
    %85 = vperm.xlu0 %84, %v30
    %v86 = vpop.permute.xlu0 %85
    %89 = vset.pattern.permute.xlu0 15
    %90 = vperm.xlu0 %89, %v31
    %v91 = vpop.permute.xlu0 %90
    %94 = vset.pattern.permute.xlu0 15
    %95 = vperm.xlu0 %94, %v32
    %v96 = vpop.permute.xlu0 %95
    %99 = vset.pattern.permute.xlu0 15
    %100 = vperm.xlu0 %99, %v33
    %v101 = vpop.permute.xlu0 %100
    %104 = vset.pattern.permute.xlu0 15
    %105 = vperm.xlu0 %104, %v34
    %v106 = vpop.permute.xlu0 %105
    %109 = vset.pattern.permute.xlu0 15
    %110 = vperm.xlu0 %109, %v35
    %v111 = vpop.permute.xlu0 %110
    %114 = vset.pattern.permute.xlu0 15
    %115 = vperm.xlu0 %114, %v36
    %v116 = vpop.permute.xlu0 %115
    %119 = vset.pattern.permute.xlu0 15
    %120 = vperm.xlu0 %119, %v37
    %v121 = vpop.permute.xlu0 %120
    %124 = vset.pattern.permute.xlu0 15
    %125 = vperm.xlu0 %124, %v38
    %v126 = vpop.permute.xlu0 %125
    %129 = vset.pattern.permute.xlu0 15
    %130 = vperm.xlu0 %129, %v39
    %v131 = vpop.permute.xlu0 %130
    %134 = vset.pattern.permute.xlu0 15
    %135 = vperm.xlu0 %134, %v40
    %v136 = vpop.permute.xlu0 %135
    %vm138 = vcmask 523392
    %139 = vst.msk [vmem:[#allocation5] sm:$0xff] %vm138, %v61
    %140 = vst.msk [vmem:[#allocation5 + $0x8] sm:$0xff] %vm138, %v66
    %141 = vst.msk [vmem:[#allocation5 + $0x40] sm:$0xff] %vm138, %v71
    %142 = vst.msk [vmem:[#allocation5 + $0x48] sm:$0xff] %vm138, %v76
    %143 = vst.msk [vmem:[#allocation5 + $0x80] sm:$0xff] %vm138, %v81
    %144 = vst.msk [vmem:[#allocation5 + $0x88] sm:$0xff] %vm138, %v86
    %145 = vst.msk [vmem:[#allocation5 + $0xc0] sm:$0xff] %vm138, %v91
    %146 = vst.msk [vmem:[#allocation5 + $0xc8] sm:$0xff] %vm138, %v96
    %147 = vst.msk [vmem:[#allocation5 + $0x100] sm:$0xff] %vm138, %v101
    %148 = vst.msk [vmem:[#allocation5 + $0x108] sm:$0xff] %vm138, %v106
    %149 = vst.msk [vmem:[#allocation5 + $0x140] sm:$0xff] %vm138, %v111
    %150 = vst.msk [vmem:[#allocation5 + $0x148] sm:$0xff] %vm138, %v116
    %151 = vst.msk [vmem:[#allocation5 + $0x180] sm:$0xff] %vm138, %v121
    %152 = vst.msk [vmem:[#allocation5 + $0x188] sm:$0xff] %vm138, %v126
    %153 = vst.msk [vmem:[#allocation5 + $0x1c0] sm:$0xff] %vm138, %v131
    %154 = vst.msk [vmem:[#allocation5 + $0x1c8] sm:$0xff] %vm138, %v136
    %v155 = vperm.slane %v26, 7
    %v156 = vperm.slane %v28, 7
    %v157 = vperm.slane %v30, 7
    %v158 = vperm.slane %v32, 7
    %v159 = vperm.slane %v34, 7
    %v160 = vperm.slane %v36, 7
    %v161 = vperm.slane %v38, 7
    %v162 = vperm.slane %v40, 7
    %163 = vst.msk [vmem:[#allocation5 + $0x10] sm:$0xff] %vm41, %v155
    %164 = vst.msk [vmem:[#allocation5 + $0x18] sm:$0xff] %vm41, %v155
    %165 = vst.msk [vmem:[#allocation5 + $0x20] sm:$0xff] %vm41, %v155
    %166 = vst.msk [vmem:[#allocation5 + $0x28] sm:$0xff] %vm41, %v155
    %167 = vst.msk [vmem:[#allocation5 + $0x30] sm:$0xff] %vm41, %v155
    %168 = vst.msk [vmem:[#allocation5 + $0x38] sm:$0xff] %vm41, %v155
    %169 = vst.msk [vmem:[#allocation5 + $0x50] sm:$0xff] %vm41, %v156
    %170 = vst.msk [vmem:[#allocation5 + $0x58] sm:$0xff] %vm41, %v156
    %171 = vst.msk [vmem:[#allocation5 + $0x60] sm:$0xff] %vm41, %v156
    %172 = vst.msk [vmem:[#allocation5 + $0x68] sm:$0xff] %vm41, %v156
    %173 = vst.msk [vmem:[#allocation5 + $0x70] sm:$0xff] %vm41, %v156
    %174 = vst.msk [vmem:[#allocation5 + $0x78] sm:$0xff] %vm41, %v156
    %175 = vst.msk [vmem:[#allocation5 + $0x90] sm:$0xff] %vm41, %v157
    %176 = vst.msk [vmem:[#allocation5 + $0x98] sm:$0xff] %vm41, %v157
    %177 = vst.msk [vmem:[#allocation5 + $0xa0] sm:$0xff] %vm41, %v157
    %178 = vst.msk [vmem:[#allocation5 + $0xa8] sm:$0xff] %vm41, %v157
    %179 = vst.msk [vmem:[#allocation5 + $0xb0] sm:$0xff] %vm41, %v157
    %180 = vst.msk [vmem:[#allocation5 + $0xb8] sm:$0xff] %vm41, %v157
    %181 = vst.msk [vmem:[#allocation5 + $0xd0] sm:$0xff] %vm41, %v158
    %182 = vst.msk [vmem:[#allocation5 + $0xd8] sm:$0xff] %vm41, %v158
    %183 = vst.msk [vmem:[#allocation5 + $0xe0] sm:$0xff] %vm41, %v158
    %184 = vst.msk [vmem:[#allocation5 + $0xe8] sm:$0xff] %vm41, %v158
    %185 = vst.msk [vmem:[#allocation5 + $0xf0] sm:$0xff] %vm41, %v158
    %186 = vst.msk [vmem:[#allocation5 + $0xf8] sm:$0xff] %vm41, %v158
    %187 = vst.msk [vmem:[#allocation5 + $0x110] sm:$0xff] %vm41, %v159
    %188 = vst.msk [vmem:[#allocation5 + $0x118] sm:$0xff] %vm41, %v159
    %189 = vst.msk [vmem:[#allocation5 + $0x120] sm:$0xff] %vm41, %v159
    %190 = vst.msk [vmem:[#allocation5 + $0x128] sm:$0xff] %vm41, %v159
    %191 = vst.msk [vmem:[#allocation5 + $0x130] sm:$0xff] %vm41, %v159
    %192 = vst.msk [vmem:[#allocation5 + $0x138] sm:$0xff] %vm41, %v159
    %193 = vst.msk [vmem:[#allocation5 + $0x150] sm:$0xff] %vm41, %v160
    %194 = vst.msk [vmem:[#allocation5 + $0x158] sm:$0xff] %vm41, %v160
    %195 = vst.msk [vmem:[#allocation5 + $0x160] sm:$0xff] %vm41, %v160
    %196 = vst.msk [vmem:[#allocation5 + $0x168] sm:$0xff] %vm41, %v160
    %197 = vst.msk [vmem:[#allocation5 + $0x170] sm:$0xff] %vm41, %v160
    %198 = vst.msk [vmem:[#allocation5 + $0x178] sm:$0xff] %vm41, %v160
    %199 = vst.msk [vmem:[#allocation5 + $0x190] sm:$0xff] %vm41, %v161
    %200 = vst.msk [vmem:[#allocation5 + $0x198] sm:$0xff] %vm41, %v161
    %201 = vst.msk [vmem:[#allocation5 + $0x1a0] sm:$0xff] %vm41, %v161
    %202 = vst.msk [vmem:[#allocation5 + $0x1a8] sm:$0xff] %vm41, %v161
    %203 = vst.msk [vmem:[#allocation5 + $0x1b0] sm:$0xff] %vm41, %v161
    %204 = vst.msk [vmem:[#allocation5 + $0x1b8] sm:$0xff] %vm41, %v161
    %205 = vst.msk [vmem:[#allocation5 + $0x1d0] sm:$0xff] %vm41, %v162
    %206 = vst.msk [vmem:[#allocation5 + $0x1d8] sm:$0xff] %vm41, %v162
    %207 = vst.msk [vmem:[#allocation5 + $0x1e0] sm:$0xff] %vm41, %v162
    %208 = vst.msk [vmem:[#allocation5 + $0x1e8] sm:$0xff] %vm41, %v162
    %209 = vst.msk [vmem:[#allocation5 + $0x1f0] sm:$0xff] %vm41, %v162
    %210 = vst.msk [vmem:[#allocation5 + $0x1f8] sm:$0xff] %vm41, %v162
    %v211 = vrot.slane %v26, 7
    %v212 = vrot.slane %v28, 7
    %v213 = vrot.slane %v30, 7
    %v214 = vrot.slane %v32, 7
    %v215 = vrot.slane %v34, 7
    %v216 = vrot.slane %v36, 7
    %v217 = vrot.slane %v38, 7
    %v218 = vrot.slane %v40, 7
    %219 = vrot.lane.b32.xlu0 %v211, 113
    %v220 = vpop.permute.xlu0 %219
    %221 = vrot.lane.b32.xlu0 %v212, 113
    %v222 = vpop.permute.xlu0 %221
    %223 = vrot.lane.b32.xlu0 %v213, 113
    %v224 = vpop.permute.xlu0 %223
    %225 = vrot.lane.b32.xlu0 %v214, 113
    %v226 = vpop.permute.xlu0 %225
    %227 = vrot.lane.b32.xlu0 %v215, 113
    %v228 = vpop.permute.xlu0 %227
    %229 = vrot.lane.b32.xlu0 %v216, 113
    %v230 = vpop.permute.xlu0 %229
    %231 = vrot.lane.b32.xlu0 %v217, 113
    %v232 = vpop.permute.xlu0 %231
    %233 = vrot.lane.b32.xlu0 %v218, 113
    %v234 = vpop.permute.xlu0 %233
    %s235 = vtos %v220
    %v236 = vstv %s235
    %s238 = vtos %v222
    %v239 = vstv %s238
    %s241 = vtos %v224
    %v242 = vstv %s241
    %s244 = vtos %v226
    %v245 = vstv %s244
    %s247 = vtos %v228
    %v248 = vstv %s247
    %s250 = vtos %v230
    %v251 = vstv %s250
    %s253 = vtos %v232
    %v254 = vstv %s253
    %s256 = vtos %v234
    %v257 = vstv %s256
    %259 = vst.msk [vmem:[#allocation5 + $0x10] sm:$0xff] %vm138, %v236
    %260 = vst.msk [vmem:[#allocation5 + $0x18] sm:$0xff] %vm138, %v236
    %261 = vst.msk [vmem:[#allocation5 + $0x20] sm:$0xff] %vm138, %v236
    %262 = vst.msk [vmem:[#allocation5 + $0x28] sm:$0xff] %vm138, %v236
    %263 = vst.msk [vmem:[#allocation5 + $0x30] sm:$0xff] %vm138, %v236
    %264 = vst.msk [vmem:[#allocation5 + $0x38] sm:$0xff] %vm138, %v236
    %265 = vst.msk [vmem:[#allocation5 + $0x50] sm:$0xff] %vm138, %v239
    %266 = vst.msk [vmem:[#allocation5 + $0x58] sm:$0xff] %vm138, %v239
    %267 = vst.msk [vmem:[#allocation5 + $0x60] sm:$0xff] %vm138, %v239
    %268 = vst.msk [vmem:[#allocation5 + $0x68] sm:$0xff] %vm138, %v239
    %269 = vst.msk [vmem:[#allocation5 + $0x70] sm:$0xff] %vm138, %v239
    %270 = vst.msk [vmem:[#allocation5 + $0x78] sm:$0xff] %vm138, %v239
    %271 = vst.msk [vmem:[#allocation5 + $0x90] sm:$0xff] %vm138, %v242
    %272 = vst.msk [vmem:[#allocation5 + $0x98] sm:$0xff] %vm138, %v242
    %273 = vst.msk [vmem:[#allocation5 + $0xa0] sm:$0xff] %vm138, %v242
    %274 = vst.msk [vmem:[#allocation5 + $0xa8] sm:$0xff] %vm138, %v242
    %275 = vst.msk [vmem:[#allocation5 + $0xb0] sm:$0xff] %vm138, %v242
    %276 = vst.msk [vmem:[#allocation5 + $0xb8] sm:$0xff] %vm138, %v242
    %277 = vst.msk [vmem:[#allocation5 + $0xd0] sm:$0xff] %vm138, %v245
    %278 = vst.msk [vmem:[#allocation5 + $0xd8] sm:$0xff] %vm138, %v245
    %279 = vst.msk [vmem:[#allocation5 + $0xe0] sm:$0xff] %vm138, %v245
    %280 = vst.msk [vmem:[#allocation5 + $0xe8] sm:$0xff] %vm138, %v245
    %281 = vst.msk [vmem:[#allocation5 + $0xf0] sm:$0xff] %vm138, %v245
    %282 = vst.msk [vmem:[#allocation5 + $0xf8] sm:$0xff] %vm138, %v245
    %283 = vst.msk [vmem:[#allocation5 + $0x110] sm:$0xff] %vm138, %v248
    %284 = vst.msk [vmem:[#allocation5 + $0x118] sm:$0xff] %vm138, %v248
    %285 = vst.msk [vmem:[#allocation5 + $0x120] sm:$0xff] %vm138, %v248
    %286 = vst.msk [vmem:[#allocation5 + $0x128] sm:$0xff] %vm138, %v248
    %287 = vst.msk [vmem:[#allocation5 + $0x130] sm:$0xff] %vm138, %v248
    %288 = vst.msk [vmem:[#allocation5 + $0x138] sm:$0xff] %vm138, %v248
    %289 = vst.msk [vmem:[#allocation5 + $0x150] sm:$0xff] %vm138, %v251
    %290 = vst.msk [vmem:[#allocation5 + $0x158] sm:$0xff] %vm138, %v251
    %291 = vst.msk [vmem:[#allocation5 + $0x160] sm:$0xff] %vm138, %v251
    %292 = vst.msk [vmem:[#allocation5 + $0x168] sm:$0xff] %vm138, %v251
    %293 = vst.msk [vmem:[#allocation5 + $0x170] sm:$0xff] %vm138, %v251
    %294 = vst.msk [vmem:[#allocation5 + $0x178] sm:$0xff] %vm138, %v251
    %295 = vst.msk [vmem:[#allocation5 + $0x190] sm:$0xff] %vm138, %v254
    %296 = vst.msk [vmem:[#allocation5 + $0x198] sm:$0xff] %vm138, %v254
    %297 = vst.msk [vmem:[#allocation5 + $0x1a0] sm:$0xff] %vm138, %v254
    %298 = vst.msk [vmem:[#allocation5 + $0x1a8] sm:$0xff] %vm138, %v254
    %299 = vst.msk [vmem:[#allocation5 + $0x1b0] sm:$0xff] %vm138, %v254
    %300 = vst.msk [vmem:[#allocation5 + $0x1b8] sm:$0xff] %vm138, %v254
    %301 = vst.msk [vmem:[#allocation5 + $0x1d0] sm:$0xff] %vm138, %v257
    %302 = vst.msk [vmem:[#allocation5 + $0x1d8] sm:$0xff] %vm138, %v257
    %303 = vst.msk [vmem:[#allocation5 + $0x1e0] sm:$0xff] %vm138, %v257
    %304 = vst.msk [vmem:[#allocation5 + $0x1e8] sm:$0xff] %vm138, %v257
    %305 = vst.msk [vmem:[#allocation5 + $0x1f0] sm:$0xff] %vm138, %v257
    %306 = vst.msk [vmem:[#allocation5 + $0x1f8] sm:$0xff] %vm138, %v257
    // Predicated region
    $region10: #{tpu_custom_call.1} parent=1 // pred_check
      _
    $region11: #{tpu_custom_call.1} parent=1 // pred_check_branch
      %308 = sbr.rel (0) target = $region13
    $region12: #{tpu_custom_call.1} parent=1 // pred_region
      %310 = vsyncadd [#allocation4], 0
      %s311 = sshll.u32 [#allocation5], 4
      %s312 = int_to_ptr.vmem [resolvable:$true] %s311
      %s313 = sshll.u32 %s1, 4
      %s314 = int_to_ptr.hbm [resolvable:$true] %s313
      %319 = dma.vmem_to_hbm [thread:$0]  %s312, 8192, %s314, [#allocation4], 128, 128, 8
    $region13: #{tpu_custom_call.1} parent=1 // pred_fallthru
      _
    // Predicated region
    $region14: #{tpu_custom_call.1} parent=1 // pred_check
      _
    $region15: #{tpu_custom_call.1} parent=1 // pred_check_branch
      %321 = sbr.rel (0) target = $region17
    $region16: #{tpu_custom_call.1} parent=1 // pred_region
      %323 = dma.done [#allocation4], 8192
    $region17: #{tpu_custom_call.1} parent=1 // pred_fallthru
      _
    %324 = vsyncpa [#allocation3], 1
    %325 = vsyncpa [#allocation4], 1

</llo_original>
